<compile_context>
chip_gen: v7x
topology: tpu7x:2x2x1
jax: 0.10.0
libtpu: 0.0.40
codegen_flags: <defaults>
</compile_context>

<pallas_src>
import jax
import jax.numpy as jnp
import numpy as np
from jax import lax
from jax.experimental import pallas as pl
from jax.experimental.pallas import tpu as pltpu


def _round_up(x, m):
    return (x + m - 1) // m * m


def _pad_to(x, shape):
    pads = [(0, t - s) for s, t in zip(x.shape, shape)]
    if all(p == (0, 0) for p in pads):
        return x
    return jnp.pad(x, pads)


def _vmem_capacity_bytes():
    """Per-TensorCore VMEM capacity; conservative fallback if unavailable."""
    try:
        return int(pltpu.get_tpu_info().vmem_capacity_bytes)
    except Exception:
        return 64 * 1024 * 1024   # v7x per-core size; safe lower bound for v5e/v6e


def _attention_kernel(mask_ref, src_ref, tgt_ref, wc_ref, wt_ref, *out_refs):
    """One grid step = `block_b` batch elements (padded, lane-dense shapes)."""
    attn_h_ref = out_refs[0]
    score_ref = out_refs[1] if len(out_refs) == 2 else None

    Bb, Sp, Hp = src_ref.shape
    Tp = tgt_ref.shape[1]

    src = src_ref[...]                        # (Bb, Sp, Hp)  matmul dtype
    tgt = tgt_ref[...]                        # (Bb, Tp, Hp)  matmul dtype

    # --- scores = tgt @ src^T (NT form, transpose folded into MXU), f32 acc --
    scores = jnp.einsum("btd,bsd->bts", tgt, src,
                        preferred_element_type=jnp.float32)   # (Bb, Tp, Sp)

    # --- sequence mask: precomputed additive {0, -inf}, broadcast over T -----
    scores = scores + mask_ref[...]           # (Bb, 1, Sp) -> (Bb, Tp, Sp)

    # --- softmax over the src axis, float32 math on every chip generation ----
    m = jnp.max(scores, axis=-1, keepdims=True)
    e = jnp.exp(scores - m)
    denom = jnp.sum(e, axis=-1, keepdims=True)
    r = pl.reciprocal(denom, approx=True)      # EUP slot, nearly free
    r = r * (2.0 - denom * r)                  # one Newton step -> ~exact f32
    p = e * r

    # --- context: c = p @ src -> (Bb, Tp, Hp), f32 accumulation ---------------
    c = jnp.einsum("bts,bsd->btd", p.astype(src.dtype), src,
                   preferred_element_type=jnp.float32)

    # --- output projection without the concat:
    #     attn_h = c @ W_c^T + tgt @ W_t^T, on the flattened (Bb*Tp, Hp) slab
    #     so the MXU M dimension is Bb*Tp instead of Tp.
    w_c = wc_ref[...]
    w_t = wt_ref[...]
    nt = (((1,), (1,)), ((), ()))              # contract last dims (x @ w^T)
    c2 = c.astype(w_c.dtype).reshape(Bb * Tp, Hp)
    t2 = tgt.reshape(Bb * Tp, Hp)
    attn = lax.dot_general(c2, w_c, nt, preferred_element_type=jnp.float32)
    attn = attn + lax.dot_general(t2, w_t, nt, preferred_element_type=jnp.float32)
    # TODO(synk): on v6e/v7x with Hp == 128, stage [c | tgt] into a
    # (Bb*Tp, 2*Hp) VMEM slab and run one K=256 dot against W_out to fill the
    # 256-deep MXU instead of two K=128 dots.
    attn_h_ref[...] = attn.reshape(Bb, Tp, Hp).astype(attn_h_ref.dtype)

    if score_ref is not None:
        score_ref[...] = p.astype(score_ref.dtype)


def attention_forward(src, tgt, src_seq_lengths, w_out, *,
                      block_b=None, matmul_dtype=None,
                      score_dtype=jnp.bfloat16, return_align_score=True,
                      vmem_limit_bytes=None):
    """
    src:  (B, S, H)     encoder output
    tgt:  (B, T, H)     decoder output
    src_seq_lengths: (B,) or (B,1) int   valid source lengths (or None)
    w_out: (H, 2H)      nn.Linear(2H, H, bias=False).weight
    matmul_dtype: MXU input dtype; default bf16 for f32 inputs (f32 softmax
                  and f32 accumulation are always kept).
    score_dtype:  dtype of the returned alignment scores (default bf16).
    return_align_score: skip emitting p entirely when False (large HBM save).
    returns (attn_h (B,T,H), align_score (B,T,S) or None)
    """
    B, S, H = src.shape
    _, T, _ = tgt.shape
    out_dtype = src.dtype

    if matmul_dtype is None:
        matmul_dtype = jnp.bfloat16 if src.dtype == jnp.float32 else src.dtype

    isz = lambda dt: jnp.dtype(dt).itemsize
    isz_m, isz_out, isz_score = isz(matmul_dtype), isz(out_dtype), isz(score_dtype)

    # Split of the projection weight kills the in-kernel concat:
    #   attn_h = c @ W_c^T + tgt @ W_t^T.
    w_c = w_out[:, :H]          # (H, H)
    w_t = w_out[:, H:]          # (H, H)

    # Lane/sublane-friendly padded sizes (zero padding is exact for this math).
    Hp = _round_up(H, 128)
    Sp = _round_up(S, 128)
    min_isz = min([isz_m, isz_out] + ([isz_score] if return_align_score else []))
    sub = 8 if min_isz >= 4 else (16 if min_isz == 2 else 32)
    Tp = _round_up(T, sub)

    # ---------------- VMEM-budget-driven batch blocking ----------------------
    capacity = _vmem_capacity_bytes()
    if vmem_limit_bytes is None:
        vmem_limit_bytes = int(0.75 * capacity)   # ~96 MiB v5e/v6e, ~48 MiB v7x
    budget = int(0.6 * vmem_limit_bytes)

    per_b = (2 * Sp * Hp * isz_m          # src block (double-buffered)
             + 2 * Tp * Hp * isz_m        # tgt block
             + 2 * Sp * 4                 # additive mask block
             + 2 * Tp * Hp * isz_out      # attn_h output block
             + 2 * Tp * Sp * 4            # live f32 scores / exp
             + 2 * Tp * Hp * 4)           # live f32 context / proj accumulator
    if return_align_score:
        per_b += 2 * Tp * Sp * isz_score + Tp * Sp * 4
    fixed = 4 * Hp * Hp * isz_m           # W_c, W_t (double-buffered)

    if block_b is None:
        bb_budget = max(1, min(B, (budget - fixed) // per_b))
        bb = bb_budget
        if B >= 2:
            half = -(-B // 2)             # keep >=2 grid steps (v7x: 2 TCs) ...
            if half * Tp >= 128 or half >= bb:
                bb = min(bb, half)        # ... unless it badly underfills MXU M
        block_b = int(bb)
    block_b = max(1, int(block_b))

    Bp = _round_up(B, block_b)            # batch padding: no divisor constraint
    grid = (Bp // block_b,)

    # ---------------- inputs (padded / cast) ---------------------------------
    if src_seq_lengths is None:
        lengths = jnp.full((Bp,), S, dtype=jnp.int32)
    else:
        lengths = src_seq_lengths.reshape(B).astype(jnp.int32)
        if Bp > B:
            lengths = jnp.pad(lengths, (0, Bp - B), constant_values=1)

    # Additive mask: 0 on valid src positions, -inf elsewhere (also covers the
    # zero-padded src columns).  -inf (not -1e30) so that length-0 rows give
    # NaN exactly like the PyTorch reference.
    mask = jnp.where(
        jnp.arange(Sp, dtype=jnp.int32)[None, :] < lengths[:, None],
        jnp.float32(0.0), -jnp.inf).astype(jnp.float32)[:, None, :]  # (Bp,1,Sp)

    src_p = _pad_to(src, (Bp, Sp, Hp)).astype(matmul_dtype)
    tgt_p = _pad_to(tgt, (Bp, Tp, Hp)).astype(matmul_dtype)
    w_c_p = _pad_to(w_c, (Hp, Hp)).astype(matmul_dtype)
    w_t_p = _pad_to(w_t, (Hp, Hp)).astype(matmul_dtype)

    in_specs = [
        pl.BlockSpec((block_b, 1, Sp), lambda b: (b, 0, 0)),    # mask
        pl.BlockSpec((block_b, Sp, Hp), lambda b: (b, 0, 0)),   # src
        pl.BlockSpec((block_b, Tp, Hp), lambda b: (b, 0, 0)),   # tgt
        # TODO(synk): single-buffer the constant-index weight blocks
        # (pipeline_mode=pl.Buffered(1)) to reclaim VMEM for larger block_b.
        pl.BlockSpec((Hp, Hp), lambda b: (0, 0)),               # W_c
        pl.BlockSpec((Hp, Hp), lambda b: (0, 0)),               # W_t
    ]
    out_shape = [jax.ShapeDtypeStruct((Bp, Tp, Hp), out_dtype)]
    out_specs = [pl.BlockSpec((block_b, Tp, Hp), lambda b: (b, 0, 0))]
    if return_align_score:
        out_shape.append(jax.ShapeDtypeStruct((Bp, Tp, Sp), score_dtype))
        out_specs.append(pl.BlockSpec((block_b, Tp, Sp), lambda b: (b, 0, 0)))

    cost = pl.CostEstimate(
        flops=2 * Bp * Tp * Sp * Hp            # scores
            + 2 * Bp * Tp * Sp * Hp            # context
            + 2 * Bp * Tp * (2 * Hp) * Hp,     # projection
        transcendentals=Bp * Tp * Sp,          # exp
        bytes_accessed=(src_p.size + tgt_p.size + w_c_p.size + w_t_p.size) * isz_m
            + mask.size * 4
            + Bp * Tp * Hp * isz_out
            + (Bp * Tp * Sp * isz_score if return_align_score else 0),
    )

    # TODO(synk): for very long source sequences (v7x 64 MiB VMEM), add an
    # innermost "arbitrary" S-tile grid axis with an online (flash-style)
    # softmax; requires a rescaling pass for the emitted align scores.
    outs = pl.pallas_call(
        _attention_kernel,
        out_shape=tuple(out_shape),
        grid_spec=pltpu.PrefetchScalarGridSpec(
            num_scalar_prefetch=0,
            grid=grid,
            in_specs=in_specs,
            out_specs=tuple(out_specs),
        ),
        compiler_params=pltpu.CompilerParams(
            dimension_semantics=("parallel",),
            vmem_limit_bytes=int(vmem_limit_bytes),
        ),
        cost_estimate=cost,
    )(mask, src_p, tgt_p, w_c_p, w_t_p)

    attn_h = outs[0][:B, :T, :H]                 # always slice (B/T/H padding)
    if not return_align_score:
        return attn_h, None
    score = outs[1][:B, :T, :S]
    return attn_h, score


def attention_reference(src, tgt, src_seq_lengths, w_out):
    """Pure-JAX reference mirroring the PyTorch forward (for validation)."""
    B, S, H = src.shape
    scores = jnp.einsum("bth,bsh->bts", tgt, src)
    mask = (jnp.arange(S)[None, :] < src_seq_lengths.reshape(B)[:, None])[:, None, :]
    scores = jnp.where(mask, scores, -jnp.inf)
    p = jax.nn.softmax(scores, axis=-1)
    c = jnp.einsum("bts,bsh->bth", p, src)
    concat_ct = jnp.concatenate([c, tgt], axis=-1)
    attn_h = jnp.einsum("btk,hk->bth", concat_ct, w_out)
    return attn_h, p


if __name__ == "__main__":
    B, S, T, H = 2, 8, 4, 32   # batch, src_seq_len, tgt_seq_len, hidden_size

    key = jax.random.PRNGKey(0)
    k_src, k_tgt, k_w = jax.random.split(key, 3)
    src = jax.random.normal(k_src, (B, S, H), dtype=jnp.float32)
    tgt = jax.random.normal(k_tgt, (B, T, H), dtype=jnp.float32)
    # nn.Linear(2H, H, bias=False).weight -> shape (H, 2H)
    w_out = jax.random.normal(k_w, (H, 2 * H), dtype=jnp.float32) * 0.1
    src_seq_lengths = jnp.array([5, 8], dtype=jnp.int32)

    ref_h, ref_p = attention_reference(src, tgt, src_seq_lengths, w_out)

    # Full-precision path: tight comparison against the reference.
    attn_h, align_score = attention_forward(
        src, tgt, src_seq_lengths, w_out,
        matmul_dtype=jnp.float32, score_dtype=jnp.float32)
    jax.block_until_ready((attn_h, align_score))
    np.testing.assert_allclose(np.asarray(attn_h), np.asarray(ref_h),
                               rtol=1e-5, atol=1e-5)
    np.testing.assert_allclose(np.asarray(align_score), np.asarray(ref_p),
                               rtol=1e-5, atol=1e-5)

    # Default fast path (bf16 MXU inputs, bf16 align scores): sanity check.
    attn_h_bf, score_bf = attention_forward(src, tgt, src_seq_lengths, w_out)
    jax.block_until_ready((attn_h_bf, score_bf))
    np.testing.assert_allclose(np.asarray(attn_h_bf.astype(jnp.float32)),
                               np.asarray(ref_h), rtol=1e-1, atol=1e-1)
    np.testing.assert_allclose(np.asarray(score_bf.astype(jnp.float32)),
                               np.asarray(ref_p), rtol=1e-1, atol=1e-1)

    # Score-skipping path (attn_h only).
    attn_h_only, none_score = attention_forward(
        src, tgt, src_seq_lengths, w_out, return_align_score=False)
    jax.block_until_ready(attn_h_only)
    assert none_score is None
    np.testing.assert_allclose(np.asarray(attn_h_only.astype(jnp.float32)),
                               np.asarray(ref_h), rtol=1e-1, atol=1e-1)

    print("KERNEL_OK")
</pallas_src>

<mosaic_0001>
module attributes {stable_mosaic.version = 11 : i64} {
  func.func @_attention_kernel(%arg0: i32, %arg1: memref<2x1x128xf32, #tpu.memory_space<vmem>>, %arg2: memref<2x128x128xf32, #tpu.memory_space<vmem>>, %arg3: memref<2x8x128xf32, #tpu.memory_space<vmem>>, %arg4: memref<128x128xf32, #tpu.memory_space<vmem>>, %arg5: memref<128x128xf32, #tpu.memory_space<vmem>>, %arg6: memref<2x8x128xf32, #tpu.memory_space<vmem>>, %arg7: memref<2x8x128xf32, #tpu.memory_space<vmem>>) attributes {dimension_semantics = [#tpu.dimension_semantics<parallel>], iteration_bounds = array<i64: 1>, scalar_prefetch = 0 : i64, scratch_operands = 0 : i64, tpu.core_type = #tpu.core_type<tc>, window_params = [{transform_indices = @transform_0, window_bounds = array<i64: 2, 1, 128>}, {transform_indices = @transform_1, window_bounds = array<i64: 2, 128, 128>}, {transform_indices = @transform_2, window_bounds = array<i64: 2, 8, 128>}, {pipeline_mode = #tpu.pipeline_mode<synchronous>, transform_indices = @transform_3, window_bounds = array<i64: 128, 128>}, {pipeline_mode = #tpu.pipeline_mode<synchronous>, transform_indices = @transform_4, window_bounds = array<i64: 128, 128>}, {transform_indices = @transform_5, window_bounds = array<i64: 2, 8, 128>}, {transform_indices = @transform_6, window_bounds = array<i64: 2, 8, 128>}]} {
    %c0 = arith.constant 0 : index
    %c0_0 = arith.constant 0 : index
    %c0_1 = arith.constant 0 : index
    %0 = vector.load %arg2[%c0, %c0_0, %c0_1] : memref<2x128x128xf32, #tpu.memory_space<vmem>>, vector<2x128x128xf32>
    %c0_2 = arith.constant 0 : index
    %c0_3 = arith.constant 0 : index
    %c0_4 = arith.constant 0 : index
    %1 = vector.load %arg3[%c0_2, %c0_3, %c0_4] : memref<2x8x128xf32, #tpu.memory_space<vmem>>, vector<2x8x128xf32>
    "tpu.trace_start"() <{level = 10 : i32, message = "btd,bsd->bts"}> : () -> ()
    %cst = arith.constant dense<0.000000e+00> : vector<2x8x128xf32>
    %2 = tpu.matmul %1, %0, %cst {dimension_numbers = #tpu.dot_dimension_numbers<[2], [2], [1], [1], [0, 0, 0, 1, 1, 1], [0], [0]>} : vector<2x8x128xf32>, vector<2x128x128xf32>, vector<2x8x128xf32> -> vector<2x8x128xf32>
    "tpu.trace_stop"() : () -> ()
    %c0_5 = arith.constant 0 : index
    %c0_6 = arith.constant 0 : index
    %c0_7 = arith.constant 0 : index
    %3 = vector.load %arg1[%c0_5, %c0_6, %c0_7] : memref<2x1x128xf32, #tpu.memory_space<vmem>>, vector<2x1x128xf32>
    %4 = vector.broadcast %3 : vector<2x1x128xf32> to vector<2x8x128xf32>
    %5 = arith.addf %2, %4 : vector<2x8x128xf32>
    %cst_8 = arith.constant dense<0xFF800000> : vector<2x8xf32>
    %6 = vector.multi_reduction <maximumf>, %5, %cst_8 [2] : vector<2x8x128xf32> to vector<2x8xf32>
    %7 = vector.shape_cast %6 : vector<2x8xf32> to vector<2x8x1xf32>
    %8 = vector.broadcast %7 : vector<2x8x1xf32> to vector<2x8x128xf32>
    %9 = arith.subf %5, %8 : vector<2x8x128xf32>
    %10 = math.exp %9 : vector<2x8x128xf32>
    %cst_9 = arith.constant dense<0.000000e+00> : vector<2x8xf32>
    %11 = vector.multi_reduction <add>, %10, %cst_9 [2] : vector<2x8x128xf32> to vector<2x8xf32>
    %12 = vector.shape_cast %11 : vector<2x8xf32> to vector<2x8x1xf32>
    %13 = tpu.reciprocal %12 {approx = true} : vector<2x8x1xf32> -> vector<2x8x1xf32>
    %14 = arith.mulf %12, %13 : vector<2x8x1xf32>
    %cst_10 = arith.constant 2.000000e+00 : f32
    %15 = vector.broadcast %cst_10 : f32 to vector<2x8x1xf32>
    %16 = arith.subf %15, %14 : vector<2x8x1xf32>
    %17 = arith.mulf %13, %16 : vector<2x8x1xf32>
    %18 = vector.broadcast %17 : vector<2x8x1xf32> to vector<2x8x128xf32>
    %19 = arith.mulf %10, %18 : vector<2x8x128xf32>
    "tpu.trace_start"() <{level = 10 : i32, message = "bts,bsd->btd"}> : () -> ()
    %cst_11 = arith.constant dense<0.000000e+00> : vector<2x8x128xf32>
    %20 = tpu.matmul %19, %0, %cst_11 {dimension_numbers = #tpu.dot_dimension_numbers<[2], [1], [1], [2], [0, 0, 0, 1, 1, 2], [0], [0]>} : vector<2x8x128xf32>, vector<2x128x128xf32>, vector<2x8x128xf32> -> vector<2x8x128xf32>
    "tpu.trace_stop"() : () -> ()
    %c0_12 = arith.constant 0 : index
    %c0_13 = arith.constant 0 : index
    %21 = vector.load %arg4[%c0_12, %c0_13] : memref<128x128xf32, #tpu.memory_space<vmem>>, vector<128x128xf32>
    %c0_14 = arith.constant 0 : index
    %c0_15 = arith.constant 0 : index
    %22 = vector.load %arg5[%c0_14, %c0_15] : memref<128x128xf32, #tpu.memory_space<vmem>>, vector<128x128xf32>
    %23 = vector.shape_cast %20 : vector<2x8x128xf32> to vector<16x128xf32>
    %24 = vector.shape_cast %1 : vector<2x8x128xf32> to vector<16x128xf32>
    %cst_16 = arith.constant dense<0.000000e+00> : vector<16x128xf32>
    %25 = tpu.matmul %23, %21, %cst_16 {dimension_numbers = #tpu.dot_dimension_numbers<[1], [1], [0], [0], [0, 0, 1, 0], [], []>} : vector<16x128xf32>, vector<128x128xf32>, vector<16x128xf32> -> vector<16x128xf32>
    %cst_17 = arith.constant dense<0.000000e+00> : vector<16x128xf32>
    %26 = tpu.matmul %24, %22, %cst_17 {dimension_numbers = #tpu.dot_dimension_numbers<[1], [1], [0], [0], [0, 0, 1, 0], [], []>} : vector<16x128xf32>, vector<128x128xf32>, vector<16x128xf32> -> vector<16x128xf32>
    %27 = arith.addf %25, %26 : vector<16x128xf32>
    %28 = vector.shape_cast %27 : vector<16x128xf32> to vector<2x8x128xf32>
    %c0_18 = arith.constant 0 : index
    %c0_19 = arith.constant 0 : index
    %c0_20 = arith.constant 0 : index
    %29 = vector.load %arg6[%c0_18, %c0_19, %c0_20] : memref<2x8x128xf32, #tpu.memory_space<vmem>>, vector<2x8x128xf32>
    tpu.vector_store %arg6[%c0_18, %c0_19, %c0_20], %28 {strides = array<i32>} : memref<2x8x128xf32, #tpu.memory_space<vmem>>, vector<2x8x128xf32>,
    %c0_21 = arith.constant 0 : index
    %c0_22 = arith.constant 0 : index
    %c0_23 = arith.constant 0 : index
    %30 = vector.load %arg7[%c0_21, %c0_22, %c0_23] : memref<2x8x128xf32, #tpu.memory_space<vmem>>, vector<2x8x128xf32>
    tpu.vector_store %arg7[%c0_21, %c0_22, %c0_23], %19 {strides = array<i32>} : memref<2x8x128xf32, #tpu.memory_space<vmem>>, vector<2x8x128xf32>,
    return
  }
  func.func @transform_0(%arg0: i32) -> (i32, i32, i32) {
    %c0_i32 = arith.constant 0 : i32
    %c0_i32_0 = arith.constant 0 : i32
    %c0_i32_1 = arith.constant 0 : i32
    return %arg0, %c0_i32, %c0_i32_0 : i32, i32, i32
  }
  func.func @transform_1(%arg0: i32) -> (i32, i32, i32) {
    %c0_i32 = arith.constant 0 : i32
    %c0_i32_0 = arith.constant 0 : i32
    %c0_i32_1 = arith.constant 0 : i32
    return %arg0, %c0_i32, %c0_i32_0 : i32, i32, i32
  }
  func.func @transform_2(%arg0: i32) -> (i32, i32, i32) {
    %c0_i32 = arith.constant 0 : i32
    %c0_i32_0 = arith.constant 0 : i32
    %c0_i32_1 = arith.constant 0 : i32
    return %arg0, %c0_i32, %c0_i32_0 : i32, i32, i32
  }
  func.func @transform_3(%arg0: i32) -> (i32, i32) {
    %c0_i32 = arith.constant 0 : i32
    %c0_i32_0 = arith.constant 0 : i32
    %c0_i32_1 = arith.constant 0 : i32
    return %c0_i32, %c0_i32_0 : i32, i32
  }
  func.func @transform_4(%arg0: i32) -> (i32, i32) {
    %c0_i32 = arith.constant 0 : i32
    %c0_i32_0 = arith.constant 0 : i32
    %c0_i32_1 = arith.constant 0 : i32
    return %c0_i32, %c0_i32_0 : i32, i32
  }
  func.func @transform_5(%arg0: i32) -> (i32, i32, i32) {
    %c0_i32 = arith.constant 0 : i32
    %c0_i32_0 = arith.constant 0 : i32
    %c0_i32_1 = arith.constant 0 : i32
    return %arg0, %c0_i32, %c0_i32_0 : i32, i32, i32
  }
  func.func @transform_6(%arg0: i32) -> (i32, i32, i32) {
    %c0_i32 = arith.constant 0 : i32
    %c0_i32_0 = arith.constant 0 : i32
    %c0_i32_1 = arith.constant 0 : i32
    return %arg0, %c0_i32, %c0_i32_0 : i32, i32, i32
  }
}

</mosaic_0001>

<llo_original>
// kernel: tpu_custom_call.1
$region0: #{tpu_custom_call.1}
  #allocation0 [shape = 'u32[]', space=smem, size = 0x4, offset = 0x4, fixed_abs, tag = 'smem constant byte address 0x4 - core index']
  #allocation1 [shape = 'u32[144,128]{1,0:T(1,128)}', space=vmem, size = 0x12000, scoped, tag = 'internal scratch']
  %s0 = inlined_call_operand.hbm [shape: f32[2,1,128], index: 0, kind: input, shape index: {}]
  %s1 = inlined_call_operand.hbm [shape: f32[2,128,128], index: 1, kind: input, shape index: {}]
  %s2 = inlined_call_operand.hbm [shape: f32[2,8,128], index: 2, kind: input, shape index: {}]
  %s3 = inlined_call_operand.hbm [shape: f32[128,128], index: 3, kind: input, shape index: {}]
  %s4 = inlined_call_operand.hbm [shape: f32[128,128], index: 4, kind: input, shape index: {}]
  %s5 = inlined_call_operand.hbm [shape: f32[2,8,128], index: 5, kind: output, shape index: {0}]
  %s6 = inlined_call_operand.hbm [shape: f32[2,8,128], index: 6, kind: output, shape index: {1}]
  %7 = xla_tuple %s5, %s6
  %s8 = sld [smem:[#allocation0]]
  $region58: #{tpu_custom_call.1} parent=0
    _
  %s10 = ssub.s32 1, %s8
  %s11 = scalar_select 0, %s10, %s8
  $region1: #{tpu_custom_call.1} parent=0
    #allocation2 [shape = 'u8[1024]{0}', space=vmem, size = 0x400, scoped, tag = 'input window, operand 0, single buffered']
    #allocation3 [shape = 's32[1]{0}', space=sflag, size = 0x4, scoped, tag = 'scoped memory for tpu_custom_call.1']
    #allocation4 [shape = 's32[1]{0}', space=sflag, size = 0x4, scoped, tag = 'scoped memory for tpu_custom_call.1']
    #allocation5 [shape = 'u8[131072]{0}', space=vmem, size = 0x20000, scoped, tag = 'input window, operand 1, single buffered']
    #allocation6 [shape = 's32[1]{0}', space=sflag, size = 0x4, scoped, tag = 'scoped memory for tpu_custom_call.1']
    #allocation7 [shape = 'u8[8192]{0}', space=vmem, size = 0x2000, scoped, tag = 'input window, operand 2, single buffered']
    #allocation8 [shape = 'u8[65536]{0}', space=vmem, size = 0x10000, scoped, tag = 'input window, operand 3, single buffered']
    #allocation9 [shape = 's32[1]{0}', space=sflag, size = 0x4, scoped, tag = 'scoped memory for tpu_custom_call.1']
    #allocation10 [shape = 'u8[65536]{0}', space=vmem, size = 0x10000, scoped, tag = 'input window, operand 4, single buffered']
    #allocation11 [shape = 'u8[8192]{0}', space=vmem, size = 0x2000, scoped, tag = 'output window, operand 0, single buffered']
    #allocation12 [shape = 'u8[8192]{0}', space=vmem, size = 0x2000, scoped, tag = 'output window, operand 1, single buffered']
    #allocation13 [shape = 's32[1]{0}', space=sflag, size = 0x4, scoped, tag = 'scoped memory for tpu_custom_call.1']
    %12 = vsyncpa [#allocation3], 0
    %13 = vsyncpa [#allocation6], 0
    %14 = vsyncpa [#allocation9], 0
    %15 = vsyncpa [#allocation4], 0
    %16 = vsyncpa [#allocation13], 0
    // Predicated region
    $region2: #{tpu_custom_call.1} parent=1 // pred_check
      _
    $region3: #{tpu_custom_call.1} parent=1 // pred_check_branch
      %18 = sbr.rel (0) target = $region5
    $region4: #{tpu_custom_call.1} parent=1 // pred_region
      %s20 = ssub.s32 32, 32
      %21 = vsyncadd [#allocation3], %s20
      %s22 = sshll.u32 [#allocation2], 4
      %s23 = int_to_ptr.vmem [resolvable:$true] %s22
      %28 = dma.hbm_to_vmem [thread:$0]  %s0, 32, %s23, [#allocation3], 16, 16, 1
    $region5: #{tpu_custom_call.1} parent=1 // pred_fallthru
      _
    // Predicated region
    $region6: #{tpu_custom_call.1} parent=1 // pred_check
      _
    $region7: #{tpu_custom_call.1} parent=1 // pred_check_branch
      %30 = sbr.rel (0) target = $region9
    $region8: #{tpu_custom_call.1} parent=1 // pred_region
      %s32 = ssub.s32 4096, 4096
      %33 = vsyncadd [#allocation6], %s32
      %s34 = sshll.u32 [#allocation5], 4
      %s35 = int_to_ptr.vmem [resolvable:$true] %s34
      %40 = dma.hbm_to_vmem [thread:$0]  %s1, 4096, %s35, [#allocation6], 128, 128, 8
    $region9: #{tpu_custom_call.1} parent=1 // pred_fallthru
      _
    // Predicated region
    $region10: #{tpu_custom_call.1} parent=1 // pred_check
      _
    $region11: #{tpu_custom_call.1} parent=1 // pred_check_branch
      %42 = sbr.rel (0) target = $region13
    $region12: #{tpu_custom_call.1} parent=1 // pred_region
      %s44 = ssub.s32 256, 256
      %45 = vsyncadd [#allocation6], %s44
      %s46 = sshll.u32 [#allocation7], 4
      %s47 = int_to_ptr.vmem [resolvable:$true] %s46
      %52 = dma.hbm_to_vmem [thread:$0]  %s2, 256, %s47, [#allocation6], 128, 128, 8
    $region13: #{tpu_custom_call.1} parent=1 // pred_fallthru
      _
    // Predicated region
    $region14: #{tpu_custom_call.1} parent=1 // pred_check
      _
    $region15: #{tpu_custom_call.1} parent=1 // pred_check_branch
      %54 = sbr.rel (0) target = $region17
    $region16: #{tpu_custom_call.1} parent=1 // pred_region
      %s56 = ssub.s32 2048, 2048
      %57 = vsyncadd [#allocation9], %s56
      %s58 = sshll.u32 [#allocation8], 4
      %s59 = int_to_ptr.vmem [resolvable:$true] %s58
      %64 = dma.hbm_to_vmem [thread:$0]  %s3, 2048, %s59, [#allocation9], 128, 128, 8
    $region17: #{tpu_custom_call.1} parent=1 // pred_fallthru
      _
    // Predicated region
    $region18: #{tpu_custom_call.1} parent=1 // pred_check
      _
    $region19: #{tpu_custom_call.1} parent=1 // pred_check_branch
      %66 = sbr.rel (0) target = $region21
    $region20: #{tpu_custom_call.1} parent=1 // pred_region
      %s68 = ssub.s32 2048, 2048
      %69 = vsyncadd [#allocation9], %s68
      %s70 = sshll.u32 [#allocation10], 4
      %s71 = int_to_ptr.vmem [resolvable:$true] %s70
      %76 = dma.hbm_to_vmem [thread:$0]  %s4, 2048, %s71, [#allocation9], 128, 128, 8
    $region21: #{tpu_custom_call.1} parent=1 // pred_fallthru
      _
    // Predicated region
    $region22: #{tpu_custom_call.1} parent=1 // pred_check
      _
    $region23: #{tpu_custom_call.1} parent=1 // pred_check_branch
      %78 = sbr.rel (0) target = $region25
    $region24: #{tpu_custom_call.1} parent=1 // pred_region
      %79 = dma.done [#allocation3], 32
    $region25: #{tpu_custom_call.1} parent=1 // pred_fallthru
      _
    // Predicated region
    $region26: #{tpu_custom_call.1} parent=1 // pred_check
      _
    $region27: #{tpu_custom_call.1} parent=1 // pred_check_branch
      %81 = sbr.rel (0) target = $region29
    $region28: #{tpu_custom_call.1} parent=1 // pred_region
      %82 = dma.done [#allocation6], 4096
    $region29: #{tpu_custom_call.1} parent=1 // pred_fallthru
      _
    // Predicated region
    $region30: #{tpu_custom_call.1} parent=1 // pred_check
      _
    $region31: #{tpu_custom_call.1} parent=1 // pred_check_branch
      %84 = sbr.rel (0) target = $region33
    $region32: #{tpu_custom_call.1} parent=1 // pred_region
      %85 = dma.done [#allocation6], 256
    $region33: #{tpu_custom_call.1} parent=1 // pred_fallthru
      _
    // Predicated region
    $region34: #{tpu_custom_call.1} parent=1 // pred_check
      _
    $region35: #{tpu_custom_call.1} parent=1 // pred_check_branch
      %87 = sbr.rel (0) target = $region37
    $region36: #{tpu_custom_call.1} parent=1 // pred_region
      %88 = dma.done [#allocation9], 2048
    $region37: #{tpu_custom_call.1} parent=1 // pred_fallthru
      _
    // Predicated region
    $region38: #{tpu_custom_call.1} parent=1 // pred_check
      _
    $region39: #{tpu_custom_call.1} parent=1 // pred_check_branch
      %90 = sbr.rel (0) target = $region41
    $region40: #{tpu_custom_call.1} parent=1 // pred_region
      %91 = dma.done [#allocation9], 2048
    $region41: #{tpu_custom_call.1} parent=1 // pred_fallthru
      _
    %v92 = vld [vmem:[#allocation5] sm:$0xff]
    %v93 = vld [vmem:[#allocation5 + $0x8] sm:$0xff]
    %v94 = vld [vmem:[#allocation5 + $0x10] sm:$0xff]
    %v95 = vld [vmem:[#allocation5 + $0x18] sm:$0xff]
    %v96 = vld [vmem:[#allocation5 + $0x20] sm:$0xff]
    %v97 = vld [vmem:[#allocation5 + $0x28] sm:$0xff]
    %v98 = vld [vmem:[#allocation5 + $0x30] sm:$0xff]
    %v99 = vld [vmem:[#allocation5 + $0x38] sm:$0xff]
    %v100 = vld [vmem:[#allocation5 + $0x40] sm:$0xff]
    %v101 = vld [vmem:[#allocation5 + $0x48] sm:$0xff]
    %v102 = vld [vmem:[#allocation5 + $0x50] sm:$0xff]
    %v103 = vld [vmem:[#allocation5 + $0x58] sm:$0xff]
    %v104 = vld [vmem:[#allocation5 + $0x60] sm:$0xff]
    %v105 = vld [vmem:[#allocation5 + $0x68] sm:$0xff]
    %v106 = vld [vmem:[#allocation5 + $0x70] sm:$0xff]
    %v107 = vld [vmem:[#allocation5 + $0x78] sm:$0xff]
    %v108 = vld [vmem:[#allocation5 + $0x80] sm:$0xff]
    %v109 = vld [vmem:[#allocation5 + $0x88] sm:$0xff]
    %v110 = vld [vmem:[#allocation5 + $0x90] sm:$0xff]
    %v111 = vld [vmem:[#allocation5 + $0x98] sm:$0xff]
    %v112 = vld [vmem:[#allocation5 + $0xa0] sm:$0xff]
    %v113 = vld [vmem:[#allocation5 + $0xa8] sm:$0xff]
    %v114 = vld [vmem:[#allocation5 + $0xb0] sm:$0xff]
    %v115 = vld [vmem:[#allocation5 + $0xb8] sm:$0xff]
    %v116 = vld [vmem:[#allocation5 + $0xc0] sm:$0xff]
    %v117 = vld [vmem:[#allocation5 + $0xc8] sm:$0xff]
    %v118 = vld [vmem:[#allocation5 + $0xd0] sm:$0xff]
    %v119 = vld [vmem:[#allocation5 + $0xd8] sm:$0xff]
    %v120 = vld [vmem:[#allocation5 + $0xe0] sm:$0xff]
    %v121 = vld [vmem:[#allocation5 + $0xe8] sm:$0xff]
    %v122 = vld [vmem:[#allocation5 + $0xf0] sm:$0xff]
    %v123 = vld [vmem:[#allocation5 + $0xf8] sm:$0xff]
    %v124 = vld [vmem:[#allocation7] sm:$0xff]
    %v125 = vld [vmem:[#allocation7 + $0x8] sm:$0xff]
    %v126 = vld [vmem:[#allocation2] sm:$0x1]
    %v127 = vld [vmem:[#allocation2 + $0x1] sm:$0x1]
    %v130 = vlaneseq
    %v131 = vshrl.u32 %v130, 7
    %v132 = vsub.s32 0, %v131
    %v133 = vrot.slane %v126, %v132
    %v134 = vlaneseq
    %v135 = vshrl.u32 %v134, 7
    %v136 = vsub.s32 0, %v135
    %v137 = vrot.slane %v127, %v136
    %140 = vmatprep.subr.mxu0 0.0
    %141 = vmatpush1.xpose.msra.mxu0 %v92
    %142 = vmatprep.subr.mxu0 0.0
    %143 = vmatpush1.xpose.msra.mxu0 %v93
    %144 = vmatprep.subr.mxu0 0.0
    %145 = vmatpush1.xpose.msra.mxu0 %v94
    %146 = vmatprep.subr.mxu0 0.0
    %147 = vmatpush1.xpose.msra.mxu0 %v95
    %148 = vmatprep.subr.mxu0 0.0
    %149 = vmatpush1.xpose.msra.mxu0 %v96
    %150 = vmatprep.subr.mxu0 0.0
    %151 = vmatpush1.xpose.msra.mxu0 %v97
    %152 = vmatprep.subr.mxu0 0.0
    %153 = vmatpush1.xpose.msra.mxu0 %v98
    %154 = vmatprep.subr.mxu0 0.0
    %155 = vmatpush1.xpose.msra.mxu0 %v99
    %156 = vmatprep.subr.mxu0 0.0
    %157 = vmatpush1.xpose.msra.mxu0 %v100
    %158 = vmatprep.subr.mxu0 0.0
    %159 = vmatpush1.xpose.msra.mxu0 %v101
    %160 = vmatprep.subr.mxu0 0.0
    %161 = vmatpush1.xpose.msra.mxu0 %v102
    %162 = vmatprep.subr.mxu0 0.0
    %163 = vmatpush1.xpose.msra.mxu0 %v103
    %164 = vmatprep.subr.mxu0 0.0
    %165 = vmatpush1.xpose.msra.mxu0 %v104
    %166 = vmatprep.subr.mxu0 0.0
    %167 = vmatpush1.xpose.msra.mxu0 %v105
    %168 = vmatprep.subr.mxu0 0.0
    %169 = vmatpush1.xpose.msra.mxu0 %v106
    %170 = vmatprep.subr.mxu0 0.0
    %171 = vmatpush1.xpose.msra.mxu0 %v107
    %172 = vmatprep.subr.mxu0 0.0
    %173 = vmatpush1.xpose.msra.mxu0 0.0
    %174 = vmatprep.subr.mxu0 0.0
    %175 = vmatpush1.xpose.msra.mxu0 0.0
    %176 = vmatprep.subr.mxu0 0.0
    %177 = vmatpush1.xpose.msra.mxu0 0.0
    %178 = vmatprep.subr.mxu0 0.0
    %179 = vmatpush1.xpose.msra.mxu0 0.0
    %180 = vmatprep.subr.mxu0 0.0
    %181 = vmatpush1.xpose.msra.mxu0 0.0
    %182 = vmatprep.subr.mxu0 0.0
    %183 = vmatpush1.xpose.msra.mxu0 0.0
    %184 = vmatprep.subr.mxu0 0.0
    %185 = vmatpush1.xpose.msra.mxu0 0.0
    %186 = vmatprep.subr.mxu0 0.0
    %187 = vmatpush1.xpose.msra.mxu0 0.0
    %188 = vmatprep.subr.mxu0 0.0
    %189 = vmatpush1.xpose.msra.mxu0 0.0
    %190 = vmatprep.subr.mxu0 0.0
    %191 = vmatpush1.xpose.msra.mxu0 0.0
    %192 = vmatprep.subr.mxu0 0.0
    %193 = vmatpush1.xpose.msra.mxu0 0.0
    %194 = vmatprep.subr.mxu0 0.0
    %195 = vmatpush1.xpose.msra.mxu0 0.0
    %196 = vmatprep.subr.mxu0 0.0
    %197 = vmatpush1.xpose.msra.mxu0 0.0
    %198 = vmatprep.subr.mxu0 0.0
    %199 = vmatpush1.xpose.msra.mxu0 0.0
    %200 = vmatprep.subr.mxu0 0.0
    %201 = vmatpush1.xpose.msra.mxu0 0.0
    %202 = vmatprep.subr.mxu0 0.0
    %203 = vmatpush1.xpose.msra.mxu0 0.0
    %204 = vmatprep.mubr.f32.mxu0 0.0
    %205 = vmatmul.mubr.f32.gmra.mrb[0].mxu0 %v124
    %v206 = vpop.f32.mrb[0].mxu0
    %v207 = vadd.f32 %v133, %v206
    %v208 = vpop.f32.mrb[0].mxu0
    %209 = vdwg.mxu0
    %210 = vmatprep.subr.mxu0 0.0
    %211 = vmatpush1.xpose.msra.mxu0 %v108
    %212 = vmatprep.subr.mxu0 0.0
    %213 = vmatpush1.xpose.msra.mxu0 %v109
    %214 = vmatprep.subr.mxu0 0.0
    %215 = vmatpush1.xpose.msra.mxu0 %v110
    %216 = vmatprep.subr.mxu0 0.0
    %217 = vmatpush1.xpose.msra.mxu0 %v111
    %218 = vmatprep.subr.mxu0 0.0
    %219 = vmatpush1.xpose.msra.mxu0 %v112
    %220 = vmatprep.subr.mxu0 0.0
    %221 = vmatpush1.xpose.msra.mxu0 %v113
    %222 = vmatprep.subr.mxu0 0.0
    %223 = vmatpush1.xpose.msra.mxu0 %v114
    %224 = vmatprep.subr.mxu0 0.0
    %225 = vmatpush1.xpose.msra.mxu0 %v115
    %226 = vmatprep.subr.mxu0 0.0
    %227 = vmatpush1.xpose.msra.mxu0 %v116
    %228 = vmatprep.subr.mxu0 0.0
    %229 = vmatpush1.xpose.msra.mxu0 %v117
    %230 = vmatprep.subr.mxu0 0.0
    %231 = vmatpush1.xpose.msra.mxu0 %v118
    %232 = vmatprep.subr.mxu0 0.0
    %233 = vmatpush1.xpose.msra.mxu0 %v119
    %234 = vmatprep.subr.mxu0 0.0
    %235 = vmatpush1.xpose.msra.mxu0 %v120
    %236 = vmatprep.subr.mxu0 0.0
    %237 = vmatpush1.xpose.msra.mxu0 %v121
    %238 = vmatprep.subr.mxu0 0.0
    %239 = vmatpush1.xpose.msra.mxu0 %v122
    %240 = vmatprep.subr.mxu0 0.0
    %241 = vmatpush1.xpose.msra.mxu0 %v123
    %242 = vmatprep.subr.mxu0 0.0
    %243 = vmatpush1.xpose.msra.mxu0 0.0
    %244 = vmatprep.subr.mxu0 0.0
    %245 = vmatpush1.xpose.msra.mxu0 0.0
    %246 = vmatprep.subr.mxu0 0.0
    %247 = vmatpush1.xpose.msra.mxu0 0.0
    %248 = vmatprep.subr.mxu0 0.0
    %249 = vmatpush1.xpose.msra.mxu0 0.0
    %250 = vmatprep.subr.mxu0 0.0
    %251 = vmatpush1.xpose.msra.mxu0 0.0
    %252 = vmatprep.subr.mxu0 0.0
    %253 = vmatpush1.xpose.msra.mxu0 0.0
    %254 = vmatprep.subr.mxu0 0.0
    %255 = vmatpush1.xpose.msra.mxu0 0.0
    %256 = vmatprep.subr.mxu0 0.0
    %257 = vmatpush1.xpose.msra.mxu0 0.0
    %258 = vmatprep.subr.mxu0 0.0
    %259 = vmatpush1.xpose.msra.mxu0 0.0
    %260 = vmatprep.subr.mxu0 0.0
    %261 = vmatpush1.xpose.msra.mxu0 0.0
    %262 = vmatprep.subr.mxu0 0.0
    %263 = vmatpush1.xpose.msra.mxu0 0.0
    %264 = vmatprep.subr.mxu0 0.0
    %265 = vmatpush1.xpose.msra.mxu0 0.0
    %266 = vmatprep.subr.mxu0 0.0
    %267 = vmatpush1.xpose.msra.mxu0 0.0
    %268 = vmatprep.subr.mxu0 0.0
    %269 = vmatpush1.xpose.msra.mxu0 0.0
    %270 = vmatprep.subr.mxu0 0.0
    %271 = vmatpush1.xpose.msra.mxu0 0.0
    %272 = vmatprep.subr.mxu0 0.0
    %273 = vmatpush1.xpose.msra.mxu0 0.0
    %274 = vmatprep.mubr.f32.mxu0 0.0
    %275 = vmatmul.mubr.f32.gmra.mrb[0].mxu0 %v125
    %v276 = vpop.f32.mrb[0].mxu0
    %v277 = vadd.f32 %v137, %v276
    %v278 = vpop.f32.mrb[0].mxu0
    %279 = vdwg.mxu0
    %280 = vmax.xlane.f32.xlu0 %v207
    %v281 = vpop.xlane.xlu0 %280
    %282 = vmax.xlane.f32.xlu0 %v277
    %v283 = vpop.xlane.xlu0 %282
    %v284 = vsub.f32 %v207, %v281
    %v285 = vsub.f32 %v277, %v283
    %v286 = vmul.f32 %v284, 1.442695
    %v287 = vpow.pop %v286
    %v288 = vmul.f32 %v285, 1.442695
    %v289 = vpow.pop %v288
    %290 = vadd.xlane.f32.xlu0 %v287
    %v291 = vpop.xlane.xlu0 %290
    %292 = vadd.xlane.f32.xlu0 %v289
    %v293 = vpop.xlane.xlu0 %292
    %v294 = vrcp.pop %v291
    %v295 = vrcp.pop %v293
    %v296 = vmul.f32 %v291, %v294
    %v297 = vmul.f32 %v293, %v295
    %v298 = vsub.f32 2.0, %v296
    %v299 = vsub.f32 2.0, %v297
    %v300 = vmul.f32 %v294, %v298
    %v301 = vmul.f32 %v295, %v299
    %v302 = vmul.f32 %v287, %v300
    %v303 = vmul.f32 %v289, %v301
    %304 = vmatprep.subr.mxu0 0.0
    %305 = vmatpush1.msra.mxu0 %v92
    %306 = vmatprep.subr.mxu0 0.0
    %307 = vmatpush1.msra.mxu0 %v93
    %308 = vmatprep.subr.mxu0 0.0
    %309 = vmatpush1.msra.mxu0 %v94
    %310 = vmatprep.subr.mxu0 0.0
    %311 = vmatpush1.msra.mxu0 %v95
    %312 = vmatprep.subr.mxu0 0.0
    %313 = vmatpush1.msra.mxu0 %v96
    %314 = vmatprep.subr.mxu0 0.0
    %315 = vmatpush1.msra.mxu0 %v97
    %316 = vmatprep.subr.mxu0 0.0
    %317 = vmatpush1.msra.mxu0 %v98
    %318 = vmatprep.subr.mxu0 0.0
    %319 = vmatpush1.msra.mxu0 %v99
    %320 = vmatprep.subr.mxu0 0.0
    %321 = vmatpush1.msra.mxu0 %v100
    %322 = vmatprep.subr.mxu0 0.0
    %323 = vmatpush1.msra.mxu0 %v101
    %324 = vmatprep.subr.mxu0 0.0
    %325 = vmatpush1.msra.mxu0 %v102
    %326 = vmatprep.subr.mxu0 0.0
    %327 = vmatpush1.msra.mxu0 %v103
    %328 = vmatprep.subr.mxu0 0.0
    %329 = vmatpush1.msra.mxu0 %v104
    %330 = vmatprep.subr.mxu0 0.0
    %331 = vmatpush1.msra.mxu0 %v105
    %332 = vmatprep.subr.mxu0 0.0
    %333 = vmatpush1.msra.mxu0 %v106
    %334 = vmatprep.subr.mxu0 0.0
    %335 = vmatpush1.msra.mxu0 %v107
    %336 = vmatprep.subr.mxu0 0.0
    %337 = vmatpush1.msra.mxu0 0.0
    %338 = vmatprep.subr.mxu0 0.0
    %339 = vmatpush1.msra.mxu0 0.0
    %340 = vmatprep.subr.mxu0 0.0
    %341 = vmatpush1.msra.mxu0 0.0
    %342 = vmatprep.subr.mxu0 0.0
    %343 = vmatpush1.msra.mxu0 0.0
    %344 = vmatprep.subr.mxu0 0.0
    %345 = vmatpush1.msra.mxu0 0.0
    %346 = vmatprep.subr.mxu0 0.0
    %347 = vmatpush1.msra.mxu0 0.0
    %348 = vmatprep.subr.mxu0 0.0
    %349 = vmatpush1.msra.mxu0 0.0
    %350 = vmatprep.subr.mxu0 0.0
    %351 = vmatpush1.msra.mxu0 0.0
    %352 = vmatprep.subr.mxu0 0.0
    %353 = vmatpush1.msra.mxu0 0.0
    %354 = vmatprep.subr.mxu0 0.0
    %355 = vmatpush1.msra.mxu0 0.0
    %356 = vmatprep.subr.mxu0 0.0
    %357 = vmatpush1.msra.mxu0 0.0
    %358 = vmatprep.subr.mxu0 0.0
    %359 = vmatpush1.msra.mxu0 0.0
    %360 = vmatprep.subr.mxu0 0.0
    %361 = vmatpush1.msra.mxu0 0.0
    %362 = vmatprep.subr.mxu0 0.0
    %363 = vmatpush1.msra.mxu0 0.0
    %364 = vmatprep.subr.mxu0 0.0
    %365 = vmatpush1.msra.mxu0 0.0
    %366 = vmatprep.subr.mxu0 0.0
    %367 = vmatpush1.msra.mxu0 0.0
    %368 = vmatprep.mubr.f32.mxu0 0.0
    %369 = vmatmul.mubr.f32.gmra.mrb[0].mxu0 %v302
    %v370 = vpop.f32.mrb[0].mxu0
    %v371 = vadd.f32 0.0, %v370
    %v372 = vpop.f32.mrb[0].mxu0
    %373 = vdwg.mxu0
    %374 = vmatprep.subr.mxu0 0.0
    %375 = vmatpush1.msra.mxu0 %v108
    %376 = vmatprep.subr.mxu0 0.0
    %377 = vmatpush1.msra.mxu0 %v109
    %378 = vmatprep.subr.mxu0 0.0
    %379 = vmatpush1.msra.mxu0 %v110
    %380 = vmatprep.subr.mxu0 0.0
    %381 = vmatpush1.msra.mxu0 %v111
    %382 = vmatprep.subr.mxu0 0.0
    %383 = vmatpush1.msra.mxu0 %v112
    %384 = vmatprep.subr.mxu0 0.0
    %385 = vmatpush1.msra.mxu0 %v113
    %386 = vmatprep.subr.mxu0 0.0
    %387 = vmatpush1.msra.mxu0 %v114
    %388 = vmatprep.subr.mxu0 0.0
    %389 = vmatpush1.msra.mxu0 %v115
    %390 = vmatprep.subr.mxu0 0.0
    %391 = vmatpush1.msra.mxu0 %v116
    %392 = vmatprep.subr.mxu0 0.0
    %393 = vmatpush1.msra.mxu0 %v117
    %394 = vmatprep.subr.mxu0 0.0
    %395 = vmatpush1.msra.mxu0 %v118
    %396 = vmatprep.subr.mxu0 0.0
    %397 = vmatpush1.msra.mxu0 %v119
    %398 = vmatprep.subr.mxu0 0.0
    %399 = vmatpush1.msra.mxu0 %v120
    %400 = vmatprep.subr.mxu0 0.0
    %401 = vmatpush1.msra.mxu0 %v121
    %402 = vmatprep.subr.mxu0 0.0
    %403 = vmatpush1.msra.mxu0 %v122
    %404 = vmatprep.subr.mxu0 0.0
    %405 = vmatpush1.msra.mxu0 %v123
    %406 = vmatprep.subr.mxu0 0.0
    %407 = vmatpush1.msra.mxu0 0.0
    %408 = vmatprep.subr.mxu0 0.0
    %409 = vmatpush1.msra.mxu0 0.0
    %410 = vmatprep.subr.mxu0 0.0
    %411 = vmatpush1.msra.mxu0 0.0
    %412 = vmatprep.subr.mxu0 0.0
    %413 = vmatpush1.msra.mxu0 0.0
    %414 = vmatprep.subr.mxu0 0.0
    %415 = vmatpush1.msra.mxu0 0.0
    %416 = vmatprep.subr.mxu0 0.0
    %417 = vmatpush1.msra.mxu0 0.0
    %418 = vmatprep.subr.mxu0 0.0
    %419 = vmatpush1.msra.mxu0 0.0
    %420 = vmatprep.subr.mxu0 0.0
    %421 = vmatpush1.msra.mxu0 0.0
    %422 = vmatprep.subr.mxu0 0.0
    %423 = vmatpush1.msra.mxu0 0.0
    %424 = vmatprep.subr.mxu0 0.0
    %425 = vmatpush1.msra.mxu0 0.0
    %426 = vmatprep.subr.mxu0 0.0
    %427 = vmatpush1.msra.mxu0 0.0
    %428 = vmatprep.subr.mxu0 0.0
    %429 = vmatpush1.msra.mxu0 0.0
    %430 = vmatprep.subr.mxu0 0.0
    %431 = vmatpush1.msra.mxu0 0.0
    %432 = vmatprep.subr.mxu0 0.0
    %433 = vmatpush1.msra.mxu0 0.0
    %434 = vmatprep.subr.mxu0 0.0
    %435 = vmatpush1.msra.mxu0 0.0
    %436 = vmatprep.subr.mxu0 0.0
    %437 = vmatpush1.msra.mxu0 0.0
    %438 = vmatprep.mubr.f32.mxu0 0.0
    %439 = vmatmul.mubr.f32.gmra.mrb[0].mxu0 %v303
    %v440 = vpop.f32.mrb[0].mxu0
    %v441 = vadd.f32 0.0, %v440
    %v442 = vpop.f32.mrb[0].mxu0
    %443 = vdwg.mxu0
    %v444 = vld [vmem:[#allocation8] sm:$0xff]
    %v445 = vld [vmem:[#allocation8 + $0x8] sm:$0xff]
    %v446 = vld [vmem:[#allocation8 + $0x10] sm:$0xff]
    %v447 = vld [vmem:[#allocation8 + $0x18] sm:$0xff]
    %v448 = vld [vmem:[#allocation8 + $0x20] sm:$0xff]
    %v449 = vld [vmem:[#allocation8 + $0x28] sm:$0xff]
    %v450 = vld [vmem:[#allocation8 + $0x30] sm:$0xff]
    %v451 = vld [vmem:[#allocation8 + $0x38] sm:$0xff]
    %v452 = vld [vmem:[#allocation8 + $0x40] sm:$0xff]
    %v453 = vld [vmem:[#allocation8 + $0x48] sm:$0xff]
    %v454 = vld [vmem:[#allocation8 + $0x50] sm:$0xff]
    %v455 = vld [vmem:[#allocation8 + $0x58] sm:$0xff]
    %v456 = vld [vmem:[#allocation8 + $0x60] sm:$0xff]
    %v457 = vld [vmem:[#allocation8 + $0x68] sm:$0xff]
    %v458 = vld [vmem:[#allocation8 + $0x70] sm:$0xff]
    %v459 = vld [vmem:[#allocation8 + $0x78] sm:$0xff]
    %v460 = vld [vmem:[#allocation10] sm:$0xff]
    %v461 = vld [vmem:[#allocation10 + $0x8] sm:$0xff]
    %v462 = vld [vmem:[#allocation10 + $0x10] sm:$0xff]
    %v463 = vld [vmem:[#allocation10 + $0x18] sm:$0xff]
    %v464 = vld [vmem:[#allocation10 + $0x20] sm:$0xff]
    %v465 = vld [vmem:[#allocation10 + $0x28] sm:$0xff]
    %v466 = vld [vmem:[#allocation10 + $0x30] sm:$0xff]
    %v467 = vld [vmem:[#allocation10 + $0x38] sm:$0xff]
    %v468 = vld [vmem:[#allocation10 + $0x40] sm:$0xff]
    %v469 = vld [vmem:[#allocation10 + $0x48] sm:$0xff]
    %v470 = vld [vmem:[#allocation10 + $0x50] sm:$0xff]
    %v471 = vld [vmem:[#allocation10 + $0x58] sm:$0xff]
    %v472 = vld [vmem:[#allocation10 + $0x60] sm:$0xff]
    %v473 = vld [vmem:[#allocation10 + $0x68] sm:$0xff]
    %v474 = vld [vmem:[#allocation10 + $0x70] sm:$0xff]
    %v475 = vld [vmem:[#allocation10 + $0x78] sm:$0xff]
    %476 = vmatprep.subr.mxu0 0.0
    %477 = vmatpush1.xpose.msra.mxu0 %v460
    %478 = vmatprep.subr.mxu0 0.0
    %479 = vmatpush1.xpose.msra.mxu0 %v461
    %480 = vmatprep.subr.mxu0 0.0
    %481 = vmatpush1.xpose.msra.mxu0 %v462
    %482 = vmatprep.subr.mxu0 0.0
    %483 = vmatpush1.xpose.msra.mxu0 %v463
    %484 = vmatprep.subr.mxu0 0.0
    %485 = vmatpush1.xpose.msra.mxu0 %v464
    %486 = vmatprep.subr.mxu0 0.0
    %487 = vmatpush1.xpose.msra.mxu0 %v465
    %488 = vmatprep.subr.mxu0 0.0
    %489 = vmatpush1.xpose.msra.mxu0 %v466
    %490 = vmatprep.subr.mxu0 0.0
    %491 = vmatpush1.xpose.msra.mxu0 %v467
    %492 = vmatprep.subr.mxu0 0.0
    %493 = vmatpush1.xpose.msra.mxu0 %v468
    %494 = vmatprep.subr.mxu0 0.0
    %495 = vmatpush1.xpose.msra.mxu0 %v469
    %496 = vmatprep.subr.mxu0 0.0
    %497 = vmatpush1.xpose.msra.mxu0 %v470
    %498 = vmatprep.subr.mxu0 0.0
    %499 = vmatpush1.xpose.msra.mxu0 %v471
    %500 = vmatprep.subr.mxu0 0.0
    %501 = vmatpush1.xpose.msra.mxu0 %v472
    %502 = vmatprep.subr.mxu0 0.0
    %503 = vmatpush1.xpose.msra.mxu0 %v473
    %504 = vmatprep.subr.mxu0 0.0
    %505 = vmatpush1.xpose.msra.mxu0 %v474
    %506 = vmatprep.subr.mxu0 0.0
    %507 = vmatpush1.xpose.msra.mxu0 %v475
    %508 = vmatprep.subr.mxu0 0.0
    %509 = vmatpush1.xpose.msra.mxu0 0.0
    %510 = vmatprep.subr.mxu0 0.0
    %511 = vmatpush1.xpose.msra.mxu0 0.0
    %512 = vmatprep.subr.mxu0 0.0
    %513 = vmatpush1.xpose.msra.mxu0 0.0
    %514 = vmatprep.subr.mxu0 0.0
    %515 = vmatpush1.xpose.msra.mxu0 0.0
    %516 = vmatprep.subr.mxu0 0.0
    %517 = vmatpush1.xpose.msra.mxu0 0.0
    %518 = vmatprep.subr.mxu0 0.0
    %519 = vmatpush1.xpose.msra.mxu0 0.0
    %520 = vmatprep.subr.mxu0 0.0
    %521 = vmatpush1.xpose.msra.mxu0 0.0
    %522 = vmatprep.subr.mxu0 0.0
    %523 = vmatpush1.xpose.msra.mxu0 0.0
    %524 = vmatprep.subr.mxu0 0.0
    %525 = vmatpush1.xpose.msra.mxu0 0.0
    %526 = vmatprep.subr.mxu0 0.0
    %527 = vmatpush1.xpose.msra.mxu0 0.0
    %528 = vmatprep.subr.mxu0 0.0
    %529 = vmatpush1.xpose.msra.mxu0 0.0
    %530 = vmatprep.subr.mxu0 0.0
    %531 = vmatpush1.xpose.msra.mxu0 0.0
    %532 = vmatprep.subr.mxu0 0.0
    %533 = vmatpush1.xpose.msra.mxu0 0.0
    %534 = vmatprep.subr.mxu0 0.0
    %535 = vmatpush1.xpose.msra.mxu0 0.0
    %536 = vmatprep.subr.mxu0 0.0
    %537 = vmatpush1.xpose.msra.mxu0 0.0
    %538 = vmatprep.subr.mxu0 0.0
    %539 = vmatpush1.xpose.msra.mxu0 0.0
    %540 = vmatprep.mubr.f32.mxu0 0.0
    %541 = vmatmul.mubr.f32.gmra.mrb[0].mxu0 %v124
    %v542 = vpop.f32.mrb[0].mxu0
    %v543 = vadd.f32 0.0, %v542
    %v544 = vpop.f32.mrb[0].mxu0
    %545 = vmatprep.mubr.f32.mxu0 0.0
    %546 = vmatmul.mubr.f32.gmra.mrb[0].mxu0 %v125
    %v547 = vpop.f32.mrb[0].mxu0
    %v548 = vadd.f32 0.0, %v547
    %v549 = vpop.f32.mrb[0].mxu0
    %550 = vdwg.mxu0
    %551 = vmatprep.subr.mxu0 0.0
    %552 = vmatpush1.xpose.msra.mxu0 %v444
    %553 = vmatprep.subr.mxu0 0.0
    %554 = vmatpush1.xpose.msra.mxu0 %v445
    %555 = vmatprep.subr.mxu0 0.0
    %556 = vmatpush1.xpose.msra.mxu0 %v446
    %557 = vmatprep.subr.mxu0 0.0
    %558 = vmatpush1.xpose.msra.mxu0 %v447
    %559 = vmatprep.subr.mxu0 0.0
    %560 = vmatpush1.xpose.msra.mxu0 %v448
    %561 = vmatprep.subr.mxu0 0.0
    %562 = vmatpush1.xpose.msra.mxu0 %v449
    %563 = vmatprep.subr.mxu0 0.0
    %564 = vmatpush1.xpose.msra.mxu0 %v450
    %565 = vmatprep.subr.mxu0 0.0
    %566 = vmatpush1.xpose.msra.mxu0 %v451
    %567 = vmatprep.subr.mxu0 0.0
    %568 = vmatpush1.xpose.msra.mxu0 %v452
    %569 = vmatprep.subr.mxu0 0.0
    %570 = vmatpush1.xpose.msra.mxu0 %v453
    %571 = vmatprep.subr.mxu0 0.0
    %572 = vmatpush1.xpose.msra.mxu0 %v454
    %573 = vmatprep.subr.mxu0 0.0
    %574 = vmatpush1.xpose.msra.mxu0 %v455
    %575 = vmatprep.subr.mxu0 0.0
    %576 = vmatpush1.xpose.msra.mxu0 %v456
    %577 = vmatprep.subr.mxu0 0.0
    %578 = vmatpush1.xpose.msra.mxu0 %v457
    %579 = vmatprep.subr.mxu0 0.0
    %580 = vmatpush1.xpose.msra.mxu0 %v458
    %581 = vmatprep.subr.mxu0 0.0
    %582 = vmatpush1.xpose.msra.mxu0 %v459
    %583 = vmatprep.subr.mxu0 0.0
    %584 = vmatpush1.xpose.msra.mxu0 0.0
    %585 = vmatprep.subr.mxu0 0.0
    %586 = vmatpush1.xpose.msra.mxu0 0.0
    %587 = vmatprep.subr.mxu0 0.0
    %588 = vmatpush1.xpose.msra.mxu0 0.0
    %589 = vmatprep.subr.mxu0 0.0
    %590 = vmatpush1.xpose.msra.mxu0 0.0
    %591 = vmatprep.subr.mxu0 0.0
    %592 = vmatpush1.xpose.msra.mxu0 0.0
    %593 = vmatprep.subr.mxu0 0.0
    %594 = vmatpush1.xpose.msra.mxu0 0.0
    %595 = vmatprep.subr.mxu0 0.0
    %596 = vmatpush1.xpose.msra.mxu0 0.0
    %597 = vmatprep.subr.mxu0 0.0
    %598 = vmatpush1.xpose.msra.mxu0 0.0
    %599 = vmatprep.subr.mxu0 0.0
    %600 = vmatpush1.xpose.msra.mxu0 0.0
    %601 = vmatprep.subr.mxu0 0.0
    %602 = vmatpush1.xpose.msra.mxu0 0.0
    %603 = vmatprep.subr.mxu0 0.0
    %604 = vmatpush1.xpose.msra.mxu0 0.0
    %605 = vmatprep.subr.mxu0 0.0
    %606 = vmatpush1.xpose.msra.mxu0 0.0
    %607 = vmatprep.subr.mxu0 0.0
    %608 = vmatpush1.xpose.msra.mxu0 0.0
    %609 = vmatprep.subr.mxu0 0.0
    %610 = vmatpush1.xpose.msra.mxu0 0.0
    %611 = vmatprep.subr.mxu0 0.0
    %612 = vmatpush1.xpose.msra.mxu0 0.0
    %613 = vmatprep.subr.mxu0 0.0
    %614 = vmatpush1.xpose.msra.mxu0 0.0
    %615 = vmatprep.mubr.f32.mxu0 0.0
    %616 = vmatmul.mubr.f32.gmra.mrb[0].mxu0 %v371
    %v617 = vpop.f32.mrb[0].mxu0
    %v618 = vadd.f32 %v543, %v617
    %v619 = vpop.f32.mrb[0].mxu0
    %620 = vmatprep.mubr.f32.mxu0 0.0
    %621 = vmatmul.mubr.f32.gmra.mrb[0].mxu0 %v441
    %v622 = vpop.f32.mrb[0].mxu0
    %v623 = vadd.f32 %v548, %v622
    %v624 = vpop.f32.mrb[0].mxu0
    %625 = vdwg.mxu0
    %626 = vst [vmem:[#allocation11] sm:$0xff] %v618
    %627 = vst [vmem:[#allocation11 + $0x8] sm:$0xff] %v623
    %628 = vst [vmem:[#allocation12] sm:$0xff] %v302
    %629 = vst [vmem:[#allocation12 + $0x8] sm:$0xff] %v303
    // Predicated region
    $region42: #{tpu_custom_call.1} parent=1 // pred_check
      _
    $region43: #{tpu_custom_call.1} parent=1 // pred_check_branch
      %631 = sbr.rel (0) target = $region45
    $region44: #{tpu_custom_call.1} parent=1 // pred_region
      %s633 = ssub.s32 256, 256
      %634 = vsyncadd [#allocation4], %s633
      %s635 = sshll.u32 [#allocation11], 4
      %s636 = int_to_ptr.vmem [resolvable:$true] %s635
      %641 = dma.vmem_to_hbm [thread:$0]  %s636, 256, %s5, [#allocation4], 128, 128, 8
    $region45: #{tpu_custom_call.1} parent=1 // pred_fallthru
      _
    // Predicated region
    $region46: #{tpu_custom_call.1} parent=1 // pred_check
      _
    $region47: #{tpu_custom_call.1} parent=1 // pred_check_branch
      %643 = sbr.rel (0) target = $region49
    $region48: #{tpu_custom_call.1} parent=1 // pred_region
      %s645 = ssub.s32 256, 256
      %646 = vsyncadd [#allocation13], %s645
      %s647 = sshll.u32 [#allocation12], 4
      %s648 = int_to_ptr.vmem [resolvable:$true] %s647
      %653 = dma.vmem_to_hbm [thread:$0]  %s648, 256, %s6, [#allocation13], 128, 128, 8
    $region49: #{tpu_custom_call.1} parent=1 // pred_fallthru
      _
    // Predicated region
    $region50: #{tpu_custom_call.1} parent=1 // pred_check
      _
    $region51: #{tpu_custom_call.1} parent=1 // pred_check_branch
      %655 = sbr.rel (0) target = $region53
    $region52: #{tpu_custom_call.1} parent=1 // pred_region
      %656 = dma.done [#allocation4], 256
    $region53: #{tpu_custom_call.1} parent=1 // pred_fallthru
      _
    // Predicated region
    $region54: #{tpu_custom_call.1} parent=1 // pred_check
      _
    $region55: #{tpu_custom_call.1} parent=1 // pred_check_branch
      %658 = sbr.rel (0) target = $region57
    $region56: #{tpu_custom_call.1} parent=1 // pred_region
      %659 = dma.done [#allocation13], 256
    $region57: #{tpu_custom_call.1} parent=1 // pred_fallthru
      _
    %660 = vsyncpa [#allocation3], 1
    %661 = vsyncpa [#allocation6], 1
    %662 = vsyncpa [#allocation9], 1
    %663 = vsyncpa [#allocation4], 1
    %664 = vsyncpa [#allocation13], 1

</llo_original>
